<compile_context>
chip_gen: v5e
topology: v5e:2x2
jax: 0.10.0
libtpu: 0.0.40
codegen_flags: <defaults>
</compile_context>

<pallas_src>
import math

import jax
import jax.numpy as jnp
from jax.experimental import pallas as pl
from jax.experimental.pallas import tpu as pltpu


def rnn_kernel(x_ref, w_ih_ref, w_hh_ref, b_rnn_ref, w_lin_ref, b_lin_ref,
               out_ref):
    """Single-invocation RNN forward (no grid -> no per-step grid overhead).

    x_ref     : (B, T, I)  input sequence (batch-first, as PyTorch hands it)
    w_ih_ref  : (I, H)     W_ih^T
    w_hh_ref  : (H, H)     W_hh^T
    b_rnn_ref : (1, H)     b_ih + b_hh (folded)
    w_lin_ref : (H, O)     W_lin^T
    b_lin_ref : (1, O)
    out_ref   : (B, O)     linear(h_T)
    """
    B, T, I = x_ref.shape
    H = w_hh_ref.shape[0]

    # ---- Hoisted input projection: one (B*T, I) @ (I, H) MXU pass for the whole
    #      sequence instead of T tiny per-step dots on the serial critical path.
    x_flat = x_ref[...].reshape(B * T, I)
    xp = jnp.dot(x_flat, w_ih_ref[...],
                 preferred_element_type=jnp.float32) + b_rnn_ref[...]
    xp = xp.reshape(B, T, H)          # stays a value; sliced statically below

    # Hoist loop-invariant weight load out of the recurrence.
    w_hh = w_hh_ref[...]

    # h0 == 0  =>  first step is just tanh(xp[:, 0, :]) (no recurrent matmul).
    h = jnp.tanh(xp[:, 0, :])

    # T is a short, static trip count: fully unroll with static indices so the
    # LLO scheduler sees the whole dot -> tanh chain (per-step critical path is
    # one (B,H)@(H,H) MXU dot + one EUP tanh).
    for t in range(1, T):
        h = jnp.tanh(xp[:, t, :]
                     + jnp.dot(h, w_hh, preferred_element_type=jnp.float32))

    # Final Linear applied to the last hidden state only (matches out[:, -1, :]).
    out_ref[...] = (
        jnp.dot(h, w_lin_ref[...], preferred_element_type=jnp.float32)
        + b_lin_ref[...]
    ).astype(out_ref.dtype)


def simple_rnn_forward(x, w_ih, w_hh, b_ih, b_hh, w_lin, b_lin):
    """x: (B, T, I). Weights follow PyTorch conventions:
       w_ih (H, I), w_hh (H, H), b_ih (H,), b_hh (H,), w_lin (O, H), b_lin (O,)."""
    B, T, I = x.shape
    H = w_hh.shape[0]
    O = w_lin.shape[0]

    # Glue (plain JAX, tiny one-time ops): pre-transpose weights so the kernel
    # computes x @ W, and fold the two RNN biases.  Kept in f32 (tiny shapes,
    # exact match vs the f32 reference); cast the weight dots to bf16 when H
    # scales on v6e/v7x.
    x_f32 = x.astype(jnp.float32)
    w_ih_t = jnp.transpose(w_ih).astype(jnp.float32)     # (I, H)
    w_hh_t = jnp.transpose(w_hh).astype(jnp.float32)     # (H, H)
    b_rnn = (b_ih + b_hh).reshape(1, H).astype(jnp.float32)
    w_lin_t = jnp.transpose(w_lin).astype(jnp.float32)   # (H, O)
    b_lin2 = b_lin.reshape(1, O).astype(jnp.float32)

    vmem = pl.BlockSpec(memory_space=pltpu.MemorySpace.VMEM)
    out = pl.pallas_call(
        rnn_kernel,
        out_shape=jax.ShapeDtypeStruct((B, O), jnp.float32),
        in_specs=[vmem] * 6,                 # everything resident in VMEM
        out_specs=vmem,
    )(x_f32, w_ih_t, w_hh_t, b_rnn, w_lin_t, b_lin2)
    return out


def reference_forward(x, w_ih, w_hh, b_ih, b_hh, w_lin, b_lin):
    """Pure-JAX reference mirroring the PyTorch forward."""
    B, T, I = x.shape
    H = w_hh.shape[0]
    h = jnp.zeros((B, H), jnp.float32)
    for t in range(T):
        h = jnp.tanh(x[:, t, :] @ w_ih.T + b_ih + h @ w_hh.T + b_hh)
    return h @ w_lin.T + b_lin


if __name__ == "__main__":
    # Small shapes consistent with the module's forward:
    # x: (batch, seq, input_size); RNN hidden_size; Linear -> output_size.
    B, T, I, H, O = 2, 8, 32, 32, 16

    key = jax.random.PRNGKey(0)
    kx, k1, k2, k3, k4, k5, k6 = jax.random.split(key, 7)

    x = jax.random.normal(kx, (B, T, I), dtype=jnp.float32)

    # Deterministic parameter init following PyTorch's uniform(-1/sqrt(H), 1/sqrt(H)).
    stdv = 1.0 / math.sqrt(H)
    w_ih = jax.random.uniform(k1, (H, I), jnp.float32, -stdv, stdv)
    w_hh = jax.random.uniform(k2, (H, H), jnp.float32, -stdv, stdv)
    b_ih = jax.random.uniform(k3, (H,), jnp.float32, -stdv, stdv)
    b_hh = jax.random.uniform(k4, (H,), jnp.float32, -stdv, stdv)
    w_lin = jax.random.uniform(k5, (O, H), jnp.float32, -stdv, stdv)
    b_lin = jax.random.uniform(k6, (O,), jnp.float32, -stdv, stdv)

    out = simple_rnn_forward(x, w_ih, w_hh, b_ih, b_hh, w_lin, b_lin)
    out = jax.block_until_ready(out)

    ref = reference_forward(x, w_ih, w_hh, b_ih, b_hh, w_lin, b_lin)
    assert out.shape == (B, O)
    assert jnp.allclose(out, ref, atol=1e-5, rtol=1e-5), "mismatch vs reference"

    print("KERNEL_OK")
</pallas_src>

<mosaic_0001>
module attributes {stable_mosaic.version = 11 : i64} {
  func.func @rnn_kernel(%arg0: memref<2x8x32xf32, #tpu.memory_space<vmem>>, %arg1: memref<32x32xf32, #tpu.memory_space<vmem>>, %arg2: memref<32x32xf32, #tpu.memory_space<vmem>>, %arg3: memref<1x32xf32, #tpu.memory_space<vmem>>, %arg4: memref<32x16xf32, #tpu.memory_space<vmem>>, %arg5: memref<1x16xf32, #tpu.memory_space<vmem>>, %arg6: memref<2x16xf32, #tpu.memory_space<vmem>>) attributes {dimension_semantics = [], scalar_prefetch = 0 : i64, scratch_operands = 0 : i64, tpu.core_type = #tpu.core_type<tc>} {
    %c0 = arith.constant 0 : index
    %c0_0 = arith.constant 0 : index
    %c0_1 = arith.constant 0 : index
    %0 = vector.load %arg0[%c0, %c0_0, %c0_1] : memref<2x8x32xf32, #tpu.memory_space<vmem>>, vector<2x8x32xf32>
    %1 = vector.shape_cast %0 : vector<2x8x32xf32> to vector<16x32xf32>
    %c0_2 = arith.constant 0 : index
    %c0_3 = arith.constant 0 : index
    %2 = vector.load %arg1[%c0_2, %c0_3] : memref<32x32xf32, #tpu.memory_space<vmem>>, vector<32x32xf32>
    %cst = arith.constant dense<0.000000e+00> : vector<16x32xf32>
    %3 = tpu.matmul %1, %2, %cst {dimension_numbers = #tpu.dot_dimension_numbers<[1], [0], [0], [1], [0, 0, 1, 1], [], []>} : vector<16x32xf32>, vector<32x32xf32>, vector<16x32xf32> -> vector<16x32xf32>
    %c0_4 = arith.constant 0 : index
    %c0_5 = arith.constant 0 : index
    %4 = vector.load %arg3[%c0_4, %c0_5] : memref<1x32xf32, #tpu.memory_space<vmem>>, vector<1x32xf32>
    %5 = vector.broadcast %4 : vector<1x32xf32> to vector<16x32xf32>
    %6 = arith.addf %3, %5 : vector<16x32xf32>
    %7 = vector.shape_cast %6 : vector<16x32xf32> to vector<2x8x32xf32>
    %c0_6 = arith.constant 0 : index
    %c0_7 = arith.constant 0 : index
    %8 = vector.load %arg2[%c0_6, %c0_7] : memref<32x32xf32, #tpu.memory_space<vmem>>, vector<32x32xf32>
    %9 = vector.extract_strided_slice %7 {offsets = [0, 0, 0], sizes = [2, 1, 32], strides = [1, 1, 1]} : vector<2x8x32xf32> to vector<2x1x32xf32>
    %10 = vector.shape_cast %9 : vector<2x1x32xf32> to vector<2x32xf32>
    %11 = math.tanh %10 : vector<2x32xf32>
    %12 = vector.extract_strided_slice %7 {offsets = [0, 1, 0], sizes = [2, 1, 32], strides = [1, 1, 1]} : vector<2x8x32xf32> to vector<2x1x32xf32>
    %13 = vector.shape_cast %12 : vector<2x1x32xf32> to vector<2x32xf32>
    %cst_8 = arith.constant dense<0.000000e+00> : vector<2x32xf32>
    %14 = tpu.matmul %11, %8, %cst_8 {dimension_numbers = #tpu.dot_dimension_numbers<[1], [0], [0], [1], [0, 0, 1, 1], [], []>} : vector<2x32xf32>, vector<32x32xf32>, vector<2x32xf32> -> vector<2x32xf32>
    %15 = arith.addf %13, %14 : vector<2x32xf32>
    %16 = math.tanh %15 : vector<2x32xf32>
    %17 = vector.extract_strided_slice %7 {offsets = [0, 2, 0], sizes = [2, 1, 32], strides = [1, 1, 1]} : vector<2x8x32xf32> to vector<2x1x32xf32>
    %18 = vector.shape_cast %17 : vector<2x1x32xf32> to vector<2x32xf32>
    %cst_9 = arith.constant dense<0.000000e+00> : vector<2x32xf32>
    %19 = tpu.matmul %16, %8, %cst_9 {dimension_numbers = #tpu.dot_dimension_numbers<[1], [0], [0], [1], [0, 0, 1, 1], [], []>} : vector<2x32xf32>, vector<32x32xf32>, vector<2x32xf32> -> vector<2x32xf32>
    %20 = arith.addf %18, %19 : vector<2x32xf32>
    %21 = math.tanh %20 : vector<2x32xf32>
    %22 = vector.extract_strided_slice %7 {offsets = [0, 3, 0], sizes = [2, 1, 32], strides = [1, 1, 1]} : vector<2x8x32xf32> to vector<2x1x32xf32>
    %23 = vector.shape_cast %22 : vector<2x1x32xf32> to vector<2x32xf32>
    %cst_10 = arith.constant dense<0.000000e+00> : vector<2x32xf32>
    %24 = tpu.matmul %21, %8, %cst_10 {dimension_numbers = #tpu.dot_dimension_numbers<[1], [0], [0], [1], [0, 0, 1, 1], [], []>} : vector<2x32xf32>, vector<32x32xf32>, vector<2x32xf32> -> vector<2x32xf32>
    %25 = arith.addf %23, %24 : vector<2x32xf32>
    %26 = math.tanh %25 : vector<2x32xf32>
    %27 = vector.extract_strided_slice %7 {offsets = [0, 4, 0], sizes = [2, 1, 32], strides = [1, 1, 1]} : vector<2x8x32xf32> to vector<2x1x32xf32>
    %28 = vector.shape_cast %27 : vector<2x1x32xf32> to vector<2x32xf32>
    %cst_11 = arith.constant dense<0.000000e+00> : vector<2x32xf32>
    %29 = tpu.matmul %26, %8, %cst_11 {dimension_numbers = #tpu.dot_dimension_numbers<[1], [0], [0], [1], [0, 0, 1, 1], [], []>} : vector<2x32xf32>, vector<32x32xf32>, vector<2x32xf32> -> vector<2x32xf32>
    %30 = arith.addf %28, %29 : vector<2x32xf32>
    %31 = math.tanh %30 : vector<2x32xf32>
    %32 = vector.extract_strided_slice %7 {offsets = [0, 5, 0], sizes = [2, 1, 32], strides = [1, 1, 1]} : vector<2x8x32xf32> to vector<2x1x32xf32>
    %33 = vector.shape_cast %32 : vector<2x1x32xf32> to vector<2x32xf32>
    %cst_12 = arith.constant dense<0.000000e+00> : vector<2x32xf32>
    %34 = tpu.matmul %31, %8, %cst_12 {dimension_numbers = #tpu.dot_dimension_numbers<[1], [0], [0], [1], [0, 0, 1, 1], [], []>} : vector<2x32xf32>, vector<32x32xf32>, vector<2x32xf32> -> vector<2x32xf32>
    %35 = arith.addf %33, %34 : vector<2x32xf32>
    %36 = math.tanh %35 : vector<2x32xf32>
    %37 = vector.extract_strided_slice %7 {offsets = [0, 6, 0], sizes = [2, 1, 32], strides = [1, 1, 1]} : vector<2x8x32xf32> to vector<2x1x32xf32>
    %38 = vector.shape_cast %37 : vector<2x1x32xf32> to vector<2x32xf32>
    %cst_13 = arith.constant dense<0.000000e+00> : vector<2x32xf32>
    %39 = tpu.matmul %36, %8, %cst_13 {dimension_numbers = #tpu.dot_dimension_numbers<[1], [0], [0], [1], [0, 0, 1, 1], [], []>} : vector<2x32xf32>, vector<32x32xf32>, vector<2x32xf32> -> vector<2x32xf32>
    %40 = arith.addf %38, %39 : vector<2x32xf32>
    %41 = math.tanh %40 : vector<2x32xf32>
    %42 = vector.extract_strided_slice %7 {offsets = [0, 7, 0], sizes = [2, 1, 32], strides = [1, 1, 1]} : vector<2x8x32xf32> to vector<2x1x32xf32>
    %43 = vector.shape_cast %42 : vector<2x1x32xf32> to vector<2x32xf32>
    %cst_14 = arith.constant dense<0.000000e+00> : vector<2x32xf32>
    %44 = tpu.matmul %41, %8, %cst_14 {dimension_numbers = #tpu.dot_dimension_numbers<[1], [0], [0], [1], [0, 0, 1, 1], [], []>} : vector<2x32xf32>, vector<32x32xf32>, vector<2x32xf32> -> vector<2x32xf32>
    %45 = arith.addf %43, %44 : vector<2x32xf32>
    %46 = math.tanh %45 : vector<2x32xf32>
    %c0_15 = arith.constant 0 : index
    %c0_16 = arith.constant 0 : index
    %47 = vector.load %arg4[%c0_15, %c0_16] : memref<32x16xf32, #tpu.memory_space<vmem>>, vector<32x16xf32>
    %cst_17 = arith.constant dense<0.000000e+00> : vector<2x16xf32>
    %48 = tpu.matmul %46, %47, %cst_17 {dimension_numbers = #tpu.dot_dimension_numbers<[1], [0], [0], [1], [0, 0, 1, 1], [], []>} : vector<2x32xf32>, vector<32x16xf32>, vector<2x16xf32> -> vector<2x16xf32>
    %c0_18 = arith.constant 0 : index
    %c0_19 = arith.constant 0 : index
    %49 = vector.load %arg5[%c0_18, %c0_19] : memref<1x16xf32, #tpu.memory_space<vmem>>, vector<1x16xf32>
    %50 = vector.broadcast %49 : vector<1x16xf32> to vector<2x16xf32>
    %51 = arith.addf %48, %50 : vector<2x16xf32>
    %c0_20 = arith.constant 0 : index
    %c0_21 = arith.constant 0 : index
    %52 = vector.load %arg6[%c0_20, %c0_21] : memref<2x16xf32, #tpu.memory_space<vmem>>, vector<2x16xf32>
    tpu.vector_store %arg6[%c0_20, %c0_21], %51 {strides = array<i32>} : memref<2x16xf32, #tpu.memory_space<vmem>>, vector<2x16xf32>,
    return
  }
}

</mosaic_0001>

<llo_original>
// kernel: tpu_custom_call.1
$region0: #{tpu_custom_call.1}
  #allocation0 [shape = 'u32[]', space=smem, size = 0x4, offset = 0x4, fixed_abs, tag = 'smem constant byte address 0x4 - core index']
  #allocation1 [shape = 'u32[72,128]{1,0:T(1,128)}', space=vmem, size = 0x9000, scoped, tag = 'internal scratch']
  %s0 = inlined_call_operand.vmem [shape: f32[2,8,32], index: 0, kind: input, shape index: {}]
  %s1 = inlined_call_operand.vmem [shape: f32[32,32], index: 1, kind: input, shape index: {}]
  %s2 = inlined_call_operand.hbm [shape: f32[32,32], index: 2, kind: input, shape index: {}]
  %s3 = inlined_call_operand.vmem [shape: f32[1,32], index: 3, kind: input, shape index: {}]
  %s4 = inlined_call_operand.vmem [shape: f32[32,16], index: 4, kind: input, shape index: {}]
  %s5 = inlined_call_operand.vmem [shape: f32[1,16], index: 5, kind: input, shape index: {}]
  %s6 = inlined_call_operand.hbm [shape: f32[2,16], index: 6, kind: output, shape index: {}]
  %s7 = sld [smem:[#allocation0]]
  $region38: #{tpu_custom_call.1} parent=0
    _
  %s9 = ssub.s32 1, %s7
  %s10 = scalar_select 0, %s9, %s7
  $region1: #{tpu_custom_call.1} parent=0
    #allocation2 [shape = 'u8[16384]{0}', space=vmem, size = 0x4000, scoped, tag = 'input window, operand 2, single buffered']
    #allocation3 [shape = 's32[1]{0}', space=sflag, size = 0x4, scoped, tag = 'scoped memory for tpu_custom_call.1']
    #allocation4 [shape = 's32[1]{0}', space=sflag, size = 0x4, scoped, tag = 'scoped memory for tpu_custom_call.1']
    #allocation5 [shape = 'u8[1024]{0}', space=vmem, size = 0x400, scoped, tag = 'output window, operand 0, single buffered']
    %11 = vsyncpa [#allocation3], 0
    %12 = vsyncpa [#allocation4], 0
    // Predicated region
    $region2: #{tpu_custom_call.1} parent=1 // pred_check
      _
    $region3: #{tpu_custom_call.1} parent=1 // pred_check_branch
      %14 = sbr.rel (0) target = $region5
    $region4: #{tpu_custom_call.1} parent=1 // pred_region
      _
    $region5: #{tpu_custom_call.1} parent=1 // pred_fallthru
      _
    // Predicated region
    $region6: #{tpu_custom_call.1} parent=1 // pred_check
      _
    $region7: #{tpu_custom_call.1} parent=1 // pred_check_branch
      %16 = sbr.rel (0) target = $region9
    $region8: #{tpu_custom_call.1} parent=1 // pred_region
      _
    $region9: #{tpu_custom_call.1} parent=1 // pred_fallthru
      _
    // Predicated region
    $region10: #{tpu_custom_call.1} parent=1 // pred_check
      _
    $region11: #{tpu_custom_call.1} parent=1 // pred_check_branch
      %18 = sbr.rel (0) target = $region13
    $region12: #{tpu_custom_call.1} parent=1 // pred_region
      %20 = vsyncadd [#allocation3], 0
      %s21 = sshll.u32 %s2, 4
      %s22 = int_to_ptr.hbm [resolvable:$true] %s21
      %s23 = sshll.u32 [#allocation2], 4
      %s24 = int_to_ptr.vmem [resolvable:$true] %s23
      %29 = dma.hbm_to_vmem [thread:$0]  %s22, 512, %s24, [#allocation3], 128, 128, 8
    $region13: #{tpu_custom_call.1} parent=1 // pred_fallthru
      _
    // Predicated region
    $region14: #{tpu_custom_call.1} parent=1 // pred_check
      _
    $region15: #{tpu_custom_call.1} parent=1 // pred_check_branch
      %31 = sbr.rel (0) target = $region17
    $region16: #{tpu_custom_call.1} parent=1 // pred_region
      _
    $region17: #{tpu_custom_call.1} parent=1 // pred_fallthru
      _
    // Predicated region
    $region18: #{tpu_custom_call.1} parent=1 // pred_check
      _
    $region19: #{tpu_custom_call.1} parent=1 // pred_check_branch
      %33 = sbr.rel (0) target = $region21
    $region20: #{tpu_custom_call.1} parent=1 // pred_region
      _
    $region21: #{tpu_custom_call.1} parent=1 // pred_fallthru
      _
    // Predicated region
    $region22: #{tpu_custom_call.1} parent=1 // pred_check
      _
    $region23: #{tpu_custom_call.1} parent=1 // pred_check_branch
      %35 = sbr.rel (0) target = $region25
    $region24: #{tpu_custom_call.1} parent=1 // pred_region
      _
    $region25: #{tpu_custom_call.1} parent=1 // pred_fallthru
      _
    // Predicated region
    $region26: #{tpu_custom_call.1} parent=1 // pred_check
      _
    $region27: #{tpu_custom_call.1} parent=1 // pred_check_branch
      %37 = sbr.rel (0) target = $region29
    $region28: #{tpu_custom_call.1} parent=1 // pred_region
      %39 = dma.done [#allocation3], 512
    $region29: #{tpu_custom_call.1} parent=1 // pred_fallthru
      _
    %v40 = vld [vmem:[%s0] sm:$0xff]
    %v41 = vld [vmem:[%s0 + $0x8] sm:$0xff]
    %v42 = vld [vmem:[%s1] sm:$0xff]
    %v43 = vld [vmem:[%s1 + $0x8] sm:$0xff]
    %v44 = vld [vmem:[%s1 + $0x10] sm:$0xff]
    %v45 = vld [vmem:[%s1 + $0x18] sm:$0xff]
    %v46 = vld [vmem:[%s3] sm:$0x1]
    %v48 = vperm.slane %v46, 0
    %vm50 = vcmask 261120
    %v52 = vsel %vm50, %v40, 0
    %v55 = vsel %vm50, %v41, 0
    %57 = vmatpush.msra.mxu0 0.0
    %58 = vmatpush.msra.mxu0 0.0
    %59 = vmatpush.msra.mxu0 0.0
    %60 = vmatpush.msra.mxu0 0.0
    %61 = vmatpush.msra.mxu0 0.0
    %62 = vmatpush.msra.mxu0 0.0
    %63 = vmatpush.msra.mxu0 0.0
    %64 = vmatpush.msra.mxu0 0.0
    %65 = vmatpush.msra.mxu0 0.0
    %66 = vmatpush.msra.mxu0 0.0
    %67 = vmatpush.msra.mxu0 0.0
    %68 = vmatpush.msra.mxu0 0.0
    %69 = vmatpush.msra.mxu0 %v45
    %70 = vmatpush.msra.mxu0 %v44
    %71 = vmatpush.msra.mxu0 %v43
    %72 = vmatpush.msra.mxu0 %v42
    %73 = vmatmul.f32.gmra.mxu0 %v52
    %v74 = vpop.f32.mrf.mxu0
    %v75 = vadd.f32 %v48, %v74
    %76 = vmatmul.f32.gmra.mxu0 %v55
    %v77 = vpop.f32.mrf.mxu0
    %v78 = vadd.f32 %v48, %v77
    %79 = vdwg.mxu0
    %v80 = vld [vmem:[#allocation2] sm:$0xff]
    %v81 = vld [vmem:[#allocation2 + $0x8] sm:$0xff]
    %v82 = vld [vmem:[#allocation2 + $0x10] sm:$0xff]
    %v83 = vld [vmem:[#allocation2 + $0x18] sm:$0xff]
    %v84 = vtanh.pop %v75
    %v85 = vtanh.pop %v78
    %v88 = vrot.slane %v85, 7
    %vm89 = vcmask 1041409
    %v90 = vsel %vm89, %v88, %v84
    %v91 = vsel %vm50, %v90, 0
    %93 = vmatpush.msra.mxu0 0.0
    %94 = vmatpush.msra.mxu0 0.0
    %95 = vmatpush.msra.mxu0 0.0
    %96 = vmatpush.msra.mxu0 0.0
    %97 = vmatpush.msra.mxu0 0.0
    %98 = vmatpush.msra.mxu0 0.0
    %99 = vmatpush.msra.mxu0 0.0
    %100 = vmatpush.msra.mxu0 0.0
    %101 = vmatpush.msra.mxu0 0.0
    %102 = vmatpush.msra.mxu0 0.0
    %103 = vmatpush.msra.mxu0 0.0
    %104 = vmatpush.msra.mxu0 0.0
    %105 = vmatpush.msra.mxu0 %v83
    %106 = vmatpush.msra.mxu0 %v82
    %107 = vmatpush.msra.mxu0 %v81
    %108 = vmatpush.msra.mxu0 %v80
    %109 = vmatmul.f32.gmra.mxu0 %v91
    %v110 = vpop.f32.mrf.mxu0
    %v111 = vadd.f32 0.0, %v110
    %112 = vdwg.mxu0
    %v114 = vrot.slane %v111, 7
    %v117 = vadd.f32 %v75, %v114
    %v118 = vadd.f32 %v78, %v111
    %v119 = vtanh.pop %v117
    %v120 = vtanh.pop %v118
    %v123 = vrot.slane %v119, 1
    %v124 = vsel %vm89, %v120, %v123
    %v125 = vsel %vm50, %v124, 0
    %127 = vmatpush.msra.mxu0 0.0
    %128 = vmatpush.msra.mxu0 0.0
    %129 = vmatpush.msra.mxu0 0.0
    %130 = vmatpush.msra.mxu0 0.0
    %131 = vmatpush.msra.mxu0 0.0
    %132 = vmatpush.msra.mxu0 0.0
    %133 = vmatpush.msra.mxu0 0.0
    %134 = vmatpush.msra.mxu0 0.0
    %135 = vmatpush.msra.mxu0 0.0
    %136 = vmatpush.msra.mxu0 0.0
    %137 = vmatpush.msra.mxu0 0.0
    %138 = vmatpush.msra.mxu0 0.0
    %139 = vmatpush.msra.mxu0 %v83
    %140 = vmatpush.msra.mxu0 %v82
    %141 = vmatpush.msra.mxu0 %v81
    %142 = vmatpush.msra.mxu0 %v80
    %143 = vmatmul.f32.gmra.mxu0 %v125
    %v144 = vpop.f32.mrf.mxu0
    %v145 = vadd.f32 0.0, %v144
    %146 = vdwg.mxu0
    %v148 = vrot.slane %v145, 6
    %v149 = vrot.slane %v145, 7
    %v152 = vadd.f32 %v75, %v148
    %v153 = vadd.f32 %v78, %v149
    %v154 = vtanh.pop %v152
    %v155 = vtanh.pop %v153
    %v158 = vrot.slane %v154, 2
    %v159 = vrot.slane %v155, 1
    %v160 = vsel %vm89, %v159, %v158
    %v161 = vsel %vm50, %v160, 0
    %163 = vmatpush.msra.mxu0 0.0
    %164 = vmatpush.msra.mxu0 0.0
    %165 = vmatpush.msra.mxu0 0.0
    %166 = vmatpush.msra.mxu0 0.0
    %167 = vmatpush.msra.mxu0 0.0
    %168 = vmatpush.msra.mxu0 0.0
    %169 = vmatpush.msra.mxu0 0.0
    %170 = vmatpush.msra.mxu0 0.0
    %171 = vmatpush.msra.mxu0 0.0
    %172 = vmatpush.msra.mxu0 0.0
    %173 = vmatpush.msra.mxu0 0.0
    %174 = vmatpush.msra.mxu0 0.0
    %175 = vmatpush.msra.mxu0 %v83
    %176 = vmatpush.msra.mxu0 %v82
    %177 = vmatpush.msra.mxu0 %v81
    %178 = vmatpush.msra.mxu0 %v80
    %179 = vmatmul.f32.gmra.mxu0 %v161
    %v180 = vpop.f32.mrf.mxu0
    %v181 = vadd.f32 0.0, %v180
    %182 = vdwg.mxu0
    %v184 = vrot.slane %v181, 5
    %v185 = vrot.slane %v181, 6
    %v188 = vadd.f32 %v75, %v184
    %v189 = vadd.f32 %v78, %v185
    %v190 = vtanh.pop %v188
    %v191 = vtanh.pop %v189
    %v194 = vrot.slane %v190, 3
    %v195 = vrot.slane %v191, 2
    %v196 = vsel %vm89, %v195, %v194
    %v197 = vsel %vm50, %v196, 0
    %199 = vmatpush.msra.mxu0 0.0
    %200 = vmatpush.msra.mxu0 0.0
    %201 = vmatpush.msra.mxu0 0.0
    %202 = vmatpush.msra.mxu0 0.0
    %203 = vmatpush.msra.mxu0 0.0
    %204 = vmatpush.msra.mxu0 0.0
    %205 = vmatpush.msra.mxu0 0.0
    %206 = vmatpush.msra.mxu0 0.0
    %207 = vmatpush.msra.mxu0 0.0
    %208 = vmatpush.msra.mxu0 0.0
    %209 = vmatpush.msra.mxu0 0.0
    %210 = vmatpush.msra.mxu0 0.0
    %211 = vmatpush.msra.mxu0 %v83
    %212 = vmatpush.msra.mxu0 %v82
    %213 = vmatpush.msra.mxu0 %v81
    %214 = vmatpush.msra.mxu0 %v80
    %215 = vmatmul.f32.gmra.mxu0 %v197
    %v216 = vpop.f32.mrf.mxu0
    %v217 = vadd.f32 0.0, %v216
    %218 = vdwg.mxu0
    %v220 = vrot.slane %v217, 4
    %v221 = vrot.slane %v217, 5
    %v224 = vadd.f32 %v75, %v220
    %v225 = vadd.f32 %v78, %v221
    %v226 = vtanh.pop %v224
    %v227 = vtanh.pop %v225
    %v230 = vrot.slane %v226, 4
    %v231 = vrot.slane %v227, 3
    %v232 = vsel %vm89, %v231, %v230
    %v233 = vsel %vm50, %v232, 0
    %235 = vmatpush.msra.mxu0 0.0
    %236 = vmatpush.msra.mxu0 0.0
    %237 = vmatpush.msra.mxu0 0.0
    %238 = vmatpush.msra.mxu0 0.0
    %239 = vmatpush.msra.mxu0 0.0
    %240 = vmatpush.msra.mxu0 0.0
    %241 = vmatpush.msra.mxu0 0.0
    %242 = vmatpush.msra.mxu0 0.0
    %243 = vmatpush.msra.mxu0 0.0
    %244 = vmatpush.msra.mxu0 0.0
    %245 = vmatpush.msra.mxu0 0.0
    %246 = vmatpush.msra.mxu0 0.0
    %247 = vmatpush.msra.mxu0 %v83
    %248 = vmatpush.msra.mxu0 %v82
    %249 = vmatpush.msra.mxu0 %v81
    %250 = vmatpush.msra.mxu0 %v80
    %251 = vmatmul.f32.gmra.mxu0 %v233
    %v252 = vpop.f32.mrf.mxu0
    %v253 = vadd.f32 0.0, %v252
    %254 = vdwg.mxu0
    %v256 = vrot.slane %v253, 3
    %v257 = vrot.slane %v253, 4
    %v260 = vadd.f32 %v75, %v256
    %v261 = vadd.f32 %v78, %v257
    %v262 = vtanh.pop %v260
    %v263 = vtanh.pop %v261
    %v266 = vrot.slane %v262, 5
    %v267 = vrot.slane %v263, 4
    %v268 = vsel %vm89, %v267, %v266
    %v269 = vsel %vm50, %v268, 0
    %271 = vmatpush.msra.mxu0 0.0
    %272 = vmatpush.msra.mxu0 0.0
    %273 = vmatpush.msra.mxu0 0.0
    %274 = vmatpush.msra.mxu0 0.0
    %275 = vmatpush.msra.mxu0 0.0
    %276 = vmatpush.msra.mxu0 0.0
    %277 = vmatpush.msra.mxu0 0.0
    %278 = vmatpush.msra.mxu0 0.0
    %279 = vmatpush.msra.mxu0 0.0
    %280 = vmatpush.msra.mxu0 0.0
    %281 = vmatpush.msra.mxu0 0.0
    %282 = vmatpush.msra.mxu0 0.0
    %283 = vmatpush.msra.mxu0 %v83
    %284 = vmatpush.msra.mxu0 %v82
    %285 = vmatpush.msra.mxu0 %v81
    %286 = vmatpush.msra.mxu0 %v80
    %287 = vmatmul.f32.gmra.mxu0 %v269
    %v288 = vpop.f32.mrf.mxu0
    %v289 = vadd.f32 0.0, %v288
    %290 = vdwg.mxu0
    %v292 = vrot.slane %v289, 2
    %v293 = vrot.slane %v289, 3
    %v296 = vadd.f32 %v75, %v292
    %v297 = vadd.f32 %v78, %v293
    %v298 = vtanh.pop %v296
    %v299 = vtanh.pop %v297
    %v302 = vrot.slane %v298, 6
    %v303 = vrot.slane %v299, 5
    %v304 = vsel %vm89, %v303, %v302
    %v305 = vsel %vm50, %v304, 0
    %307 = vmatpush.msra.mxu0 0.0
    %308 = vmatpush.msra.mxu0 0.0
    %309 = vmatpush.msra.mxu0 0.0
    %310 = vmatpush.msra.mxu0 0.0
    %311 = vmatpush.msra.mxu0 0.0
    %312 = vmatpush.msra.mxu0 0.0
    %313 = vmatpush.msra.mxu0 0.0
    %314 = vmatpush.msra.mxu0 0.0
    %315 = vmatpush.msra.mxu0 0.0
    %316 = vmatpush.msra.mxu0 0.0
    %317 = vmatpush.msra.mxu0 0.0
    %318 = vmatpush.msra.mxu0 0.0
    %319 = vmatpush.msra.mxu0 %v83
    %320 = vmatpush.msra.mxu0 %v82
    %321 = vmatpush.msra.mxu0 %v81
    %322 = vmatpush.msra.mxu0 %v80
    %323 = vmatmul.f32.gmra.mxu0 %v305
    %v324 = vpop.f32.mrf.mxu0
    %v325 = vadd.f32 0.0, %v324
    %326 = vdwg.mxu0
    %v328 = vrot.slane %v325, 1
    %v329 = vrot.slane %v325, 2
    %v332 = vadd.f32 %v75, %v328
    %v333 = vadd.f32 %v78, %v329
    %v334 = vtanh.pop %v332
    %v335 = vtanh.pop %v333
    %v336 = vld [vmem:[%s4] sm:$0xff]
    %v337 = vld [vmem:[%s4 + $0x8] sm:$0xff]
    %v338 = vld [vmem:[%s4 + $0x10] sm:$0xff]
    %v339 = vld [vmem:[%s4 + $0x18] sm:$0xff]
    %v340 = vld [vmem:[%s5] sm:$0x1]
    %v342 = vperm.slane %v340, 0
    %v346 = vrot.slane %v334, 7
    %v347 = vrot.slane %v335, 6
    %v348 = vsel %vm89, %v347, %v346
    %v349 = vsel %vm50, %v348, 0
    %351 = vmatpush.msra.mxu0 0.0
    %352 = vmatpush.msra.mxu0 0.0
    %353 = vmatpush.msra.mxu0 0.0
    %354 = vmatpush.msra.mxu0 0.0
    %355 = vmatpush.msra.mxu0 0.0
    %356 = vmatpush.msra.mxu0 0.0
    %357 = vmatpush.msra.mxu0 0.0
    %358 = vmatpush.msra.mxu0 0.0
    %359 = vmatpush.msra.mxu0 0.0
    %360 = vmatpush.msra.mxu0 0.0
    %361 = vmatpush.msra.mxu0 0.0
    %362 = vmatpush.msra.mxu0 0.0
    %363 = vmatpush.msra.mxu0 %v339
    %364 = vmatpush.msra.mxu0 %v338
    %365 = vmatpush.msra.mxu0 %v337
    %366 = vmatpush.msra.mxu0 %v336
    %367 = vmatmul.f32.gmra.mxu0 %v349
    %v368 = vpop.f32.mrf.mxu0
    %v369 = vadd.f32 %v342, %v368
    %370 = vdwg.mxu0
    %vm371 = vcmask 123904
    %372 = vst.msk [vmem:[#allocation5] sm:$0x3] %vm371, %v369
    // Predicated region
    $region30: #{tpu_custom_call.1} parent=1 // pred_check
      _
    $region31: #{tpu_custom_call.1} parent=1 // pred_check_branch
      %374 = sbr.rel (0) target = $region33
    $region32: #{tpu_custom_call.1} parent=1 // pred_region
      %376 = vsyncadd [#allocation4], 0
      %s378 = sshll.u32 [#allocation5], 4
      %s379 = int_to_ptr.vmem [resolvable:$true] %s378
      %s380 = sshll.u32 %s6, 4
      %s381 = int_to_ptr.hbm [resolvable:$true] %s380
      %383 = dma.vmem_to_hbm [thread:$0]  %s379, 32, %s381, [#allocation4]
    $region33: #{tpu_custom_call.1} parent=1 // pred_fallthru
      _
    // Predicated region
    $region34: #{tpu_custom_call.1} parent=1 // pred_check
      _
    $region35: #{tpu_custom_call.1} parent=1 // pred_check_branch
      %385 = sbr.rel (0) target = $region37
    $region36: #{tpu_custom_call.1} parent=1 // pred_region
      %387 = dma.done [#allocation4], 32
    $region37: #{tpu_custom_call.1} parent=1 // pred_fallthru
      _
    %388 = vsyncpa [#allocation3], 1
    %389 = vsyncpa [#allocation4], 1

</llo_original>
